<compile_context>
chip_gen: v7x
topology: tpu7x:2x2x1
jax: 0.10.0
libtpu: 0.0.40
codegen_flags: <defaults>
</compile_context>

<pallas_src>
import functools

import jax
import jax.numpy as jnp
from jax.experimental import pallas as pl
from jax.experimental.pallas import tpu as pltpu

_LANE = 1024            # lane-dense tile width (multiple of 128)
_MAX_BLOCK_ROWS = 512   # 512 x 1024 x 4B = 2 MiB per f32 input tile


def _dice_partials_kernel(p_ref, t_ref, out_ref, acc_pt, acc_p, acc_t, *,
                          block_rows, lane, rows_total, blocks_per_part,
                          need_mask, fold):
    """Grid = (num_parts, blocks_per_part).

    Accumulates per-lane/sublane partial sums in VMEM scratch and dumps them to
    the per-part output block on the last reduction step.  All cross-lane math
    happens outside the kernel.
    """
    i = pl.program_id(1)

    @pl.when(i == 0)
    def _():
        acc_pt[...] = jnp.zeros_like(acc_pt)
        acc_p[...] = jnp.zeros_like(acc_p)
        acc_t[...] = jnp.zeros_like(acc_t)

    p = p_ref[...].astype(jnp.float32)
    t = t_ref[...].astype(jnp.float32)

    if need_mask:
        # Only the globally-last block can be partial; zero out rows past the
        # real extent (jnp.where also neutralizes any NaN garbage in padding).
        c = pl.program_id(0)
        row0 = (c * blocks_per_part + i) * block_rows
        rid = jax.lax.broadcasted_iota(jnp.int32, (block_rows, 1), 0) + row0
        valid = rid < rows_total
        p = jnp.where(valid, p, 0.0)
        t = jnp.where(valid, t, 0.0)

    prod = p * t
    if fold:
        # Fold the tile's row dimension 8 rows at a time: pure vreg-to-vreg
        # VPU adds, no XLU cross-sublane reduction, unmasked (8, lane) stores.
        groups = block_rows // 8
        acc_pt[...] += prod.reshape(groups, 8, lane).sum(axis=0)
        acc_p[...] += p.reshape(groups, 8, lane).sum(axis=0)
        acc_t[...] += t.reshape(groups, 8, lane).sum(axis=0)
    else:
        # Tiny single-block input (block_rows < 8 or not a multiple of 8):
        # accumulator matches the block shape exactly.
        acc_pt[...] += prod
        acc_p[...] += p
        acc_t[...] += t

    @pl.when(i == pl.num_programs(1) - 1)
    def _():
        out_ref[0, 0] = acc_pt[...]
        out_ref[0, 1] = acc_p[...]
        out_ref[0, 2] = acc_t[...]


def dice_loss(prediction, target, smooth=1.0):
    """Pallas implementation of ivadomed DiceLoss.forward (returns a scalar)."""
    assert prediction.shape == target.shape
    n = prediction.size

    p_flat = prediction.reshape(-1)
    t_flat = target.reshape(-1)

    rows = n // _LANE
    rem = n - rows * _LANE

    s_pt = jnp.float32(0.0)
    s_p = jnp.float32(0.0)
    s_t = jnp.float32(0.0)

    if rows > 0:
        if rem:
            # Only hit when n is not a multiple of 1024: one prefix slice.
            p_main = jax.lax.slice(p_flat, (0,), (rows * _LANE,)).reshape(rows, _LANE)
            t_main = jax.lax.slice(t_flat, (0,), (rows * _LANE,)).reshape(rows, _LANE)
        else:
            # Metadata-only reshape, no extra HBM pass, native dtype preserved.
            p_main = p_flat.reshape(rows, _LANE)
            t_main = t_flat.reshape(rows, _LANE)

        block_rows = rows if rows <= _MAX_BLOCK_ROWS else _MAX_BLOCK_ROWS
        num_blocks = pl.cdiv(rows, block_rows)
        need_mask = (rows % block_rows) != 0
        fold = (block_rows % 8) == 0
        acc_rows = 8 if fold else block_rows

        # Megacore split: size-2 parallel axis when it divides evenly (useful
        # on v7x's 2 TensorCores, harmless on single-TC v5e/v6e).
        num_parts = 2 if (num_blocks % 2 == 0 and num_blocks >= 2) else 1
        blocks_per_part = num_blocks // num_parts

        kernel = functools.partial(
            _dice_partials_kernel,
            block_rows=block_rows,
            lane=_LANE,
            rows_total=rows,
            blocks_per_part=blocks_per_part,
            need_mask=need_mask,
            fold=fold,
        )

        partials = pl.pallas_call(
            kernel,
            out_shape=jax.ShapeDtypeStruct(
                (num_parts, 3, acc_rows, _LANE), jnp.float32),
            grid_spec=pltpu.PrefetchScalarGridSpec(
                num_scalar_prefetch=0,
                grid=(num_parts, blocks_per_part),
                in_specs=[
                    pl.BlockSpec((block_rows, _LANE),
                                 lambda c, i: (c * blocks_per_part + i, 0)),
                    pl.BlockSpec((block_rows, _LANE),
                                 lambda c, i: (c * blocks_per_part + i, 0)),
                ],
                out_specs=pl.BlockSpec((1, 3, acc_rows, _LANE),
                                       lambda c, i: (c, 0, 0, 0)),
                scratch_shapes=[pltpu.VMEM((acc_rows, _LANE), jnp.float32)] * 3,
            ),
            compiler_params=pltpu.CompilerParams(
                dimension_semantics=("parallel", "arbitrary")),
        )(p_main, t_main)

        sums = jnp.sum(partials, axis=(0, 2, 3))  # (3,) : [sum(p*t), sum(p), sum(t)]
        s_pt = sums[0]
        s_p = sums[1]
        s_t = sums[2]

    if rem or rows == 0:
        # Ragged tail (< 1024 elems) — cheaper in plain JAX than padding the
        # whole array just to feed it through the kernel.
        p_tail = p_flat[rows * _LANE:].astype(jnp.float32)
        t_tail = t_flat[rows * _LANE:].astype(jnp.float32)
        s_pt = s_pt + jnp.sum(p_tail * t_tail)
        s_p = s_p + jnp.sum(p_tail)
        s_t = s_t + jnp.sum(t_tail)

    smooth = jnp.float32(smooth)
    return -(2.0 * s_pt + smooth) / (s_p + s_t + smooth)


def _dice_loss_ref(prediction, target, smooth=1.0):
    iflat = prediction.reshape(-1).astype(jnp.float32)
    tflat = target.reshape(-1).astype(jnp.float32)
    intersection = jnp.sum(iflat * tflat)
    return -(2.0 * intersection + smooth) / (jnp.sum(iflat) + jnp.sum(tflat) + smooth)


if __name__ == "__main__":
    key = jax.random.PRNGKey(0)
    kp, kt = jax.random.split(key)

    # NCHW, same convention as the PyTorch segmentation pipeline.
    prediction = jax.nn.sigmoid(
        jax.random.normal(kp, (2, 4, 16, 16), dtype=jnp.float32))
    target = (jax.random.uniform(kt, (2, 4, 16, 16)) > 0.5).astype(jnp.float32)

    loss = jax.block_until_ready(dice_loss(prediction, target, smooth=1.0))
    ref = jax.block_until_ready(_dice_loss_ref(prediction, target, smooth=1.0))

    assert jnp.allclose(loss, ref, rtol=1e-5, atol=1e-6), (loss, ref)
    print("KERNEL_OK")
</pallas_src>

<mosaic_0001>
module attributes {stable_mosaic.version = 11 : i64} {
  func.func @_dice_partials_kernel(%arg0: i32, %arg1: i32, %arg2: memref<2x1024xf32, #tpu.memory_space<vmem>>, %arg3: memref<2x1024xf32, #tpu.memory_space<vmem>>, %arg4: memref<1x3x2x1024xf32, #tpu.memory_space<vmem>>, %arg5: memref<2x1024xf32, #tpu.memory_space<vmem>>, %arg6: memref<2x1024xf32, #tpu.memory_space<vmem>>, %arg7: memref<2x1024xf32, #tpu.memory_space<vmem>>) attributes {dimension_semantics = [#tpu.dimension_semantics<parallel>, #tpu.dimension_semantics<arbitrary>], iteration_bounds = array<i64: 1, 1>, scalar_prefetch = 0 : i64, scratch_operands = 3 : i64, tpu.core_type = #tpu.core_type<tc>, window_params = [{transform_indices = @transform_0, window_bounds = array<i64: 2, 1024>}, {transform_indices = @transform_1, window_bounds = array<i64: 2, 1024>}, {transform_indices = @transform_2, window_bounds = array<i64: 1, 3, 2, 1024>}]} {
    %c0_i32 = arith.constant 0 : i32
    %0 = arith.cmpi eq, %arg1, %c0_i32 : i32
    %1 = arith.extui %0 : i1 to i32
    %c0_i32_0 = arith.constant 0 : i32
    %2 = arith.cmpi ne, %1, %c0_i32_0 : i32
    scf.if %2 {
      %cst = arith.constant 0.000000e+00 : f32
      %18 = vector.broadcast %cst : f32 to vector<2x1024xf32>
      %c0_18 = arith.constant 0 : index
      %c0_19 = arith.constant 0 : index
      %19 = vector.load %arg5[%c0_18, %c0_19] : memref<2x1024xf32, #tpu.memory_space<vmem>>, vector<2x1024xf32>
      tpu.vector_store %arg5[%c0_18, %c0_19], %18 {strides = array<i32>} : memref<2x1024xf32, #tpu.memory_space<vmem>>, vector<2x1024xf32>,
      %cst_20 = arith.constant 0.000000e+00 : f32
      %20 = vector.broadcast %cst_20 : f32 to vector<2x1024xf32>
      %c0_21 = arith.constant 0 : index
      %c0_22 = arith.constant 0 : index
      %21 = vector.load %arg6[%c0_21, %c0_22] : memref<2x1024xf32, #tpu.memory_space<vmem>>, vector<2x1024xf32>
      tpu.vector_store %arg6[%c0_21, %c0_22], %20 {strides = array<i32>} : memref<2x1024xf32, #tpu.memory_space<vmem>>, vector<2x1024xf32>,
      %cst_23 = arith.constant 0.000000e+00 : f32
      %22 = vector.broadcast %cst_23 : f32 to vector<2x1024xf32>
      %c0_24 = arith.constant 0 : index
      %c0_25 = arith.constant 0 : index
      %23 = vector.load %arg7[%c0_24, %c0_25] : memref<2x1024xf32, #tpu.memory_space<vmem>>, vector<2x1024xf32>
      tpu.vector_store %arg7[%c0_24, %c0_25], %22 {strides = array<i32>} : memref<2x1024xf32, #tpu.memory_space<vmem>>, vector<2x1024xf32>,
    } else {
    }
    %c0 = arith.constant 0 : index
    %c0_1 = arith.constant 0 : index
    %3 = vector.load %arg2[%c0, %c0_1] : memref<2x1024xf32, #tpu.memory_space<vmem>>, vector<2x1024xf32>
    %c0_2 = arith.constant 0 : index
    %c0_3 = arith.constant 0 : index
    %4 = vector.load %arg3[%c0_2, %c0_3] : memref<2x1024xf32, #tpu.memory_space<vmem>>, vector<2x1024xf32>
    %5 = arith.mulf %3, %4 : vector<2x1024xf32>
    %c0_4 = arith.constant 0 : index
    %c0_5 = arith.constant 0 : index
    %6 = vector.load %arg5[%c0_4, %c0_5] : memref<2x1024xf32, #tpu.memory_space<vmem>>, vector<2x1024xf32>
    %7 = arith.addf %6, %5 : vector<2x1024xf32>
    %c0_6 = arith.constant 0 : index
    %c0_7 = arith.constant 0 : index
    %8 = vector.load %arg5[%c0_6, %c0_7] : memref<2x1024xf32, #tpu.memory_space<vmem>>, vector<2x1024xf32>
    tpu.vector_store %arg5[%c0_6, %c0_7], %7 {strides = array<i32>} : memref<2x1024xf32, #tpu.memory_space<vmem>>, vector<2x1024xf32>,
    %c0_8 = arith.constant 0 : index
    %c0_9 = arith.constant 0 : index
    %9 = vector.load %arg6[%c0_8, %c0_9] : memref<2x1024xf32, #tpu.memory_space<vmem>>, vector<2x1024xf32>
    %10 = arith.addf %9, %3 : vector<2x1024xf32>
    %c0_10 = arith.constant 0 : index
    %c0_11 = arith.constant 0 : index
    %11 = vector.load %arg6[%c0_10, %c0_11] : memref<2x1024xf32, #tpu.memory_space<vmem>>, vector<2x1024xf32>
    tpu.vector_store %arg6[%c0_10, %c0_11], %10 {strides = array<i32>} : memref<2x1024xf32, #tpu.memory_space<vmem>>, vector<2x1024xf32>,
    %c0_12 = arith.constant 0 : index
    %c0_13 = arith.constant 0 : index
    %12 = vector.load %arg7[%c0_12, %c0_13] : memref<2x1024xf32, #tpu.memory_space<vmem>>, vector<2x1024xf32>
    %13 = arith.addf %12, %4 : vector<2x1024xf32>
    %c0_14 = arith.constant 0 : index
    %c0_15 = arith.constant 0 : index
    %14 = vector.load %arg7[%c0_14, %c0_15] : memref<2x1024xf32, #tpu.memory_space<vmem>>, vector<2x1024xf32>
    tpu.vector_store %arg7[%c0_14, %c0_15], %13 {strides = array<i32>} : memref<2x1024xf32, #tpu.memory_space<vmem>>, vector<2x1024xf32>,
    %c0_i32_16 = arith.constant 0 : i32
    %15 = arith.cmpi eq, %arg1, %c0_i32_16 : i32
    %16 = arith.extui %15 : i1 to i32
    %c0_i32_17 = arith.constant 0 : i32
    %17 = arith.cmpi ne, %16, %c0_i32_17 : i32
    scf.if %17 {
      %c0_18 = arith.constant 0 : index
      %c0_19 = arith.constant 0 : index
      %18 = vector.load %arg5[%c0_18, %c0_19] : memref<2x1024xf32, #tpu.memory_space<vmem>>, vector<2x1024xf32>
      %c0_20 = arith.constant 0 : index
      %c0_21 = arith.constant 0 : index
      %c0_22 = arith.constant 0 : index
      %c0_23 = arith.constant 0 : index
      %19 = vector.load %arg4[%c0_20, %c0_21, %c0_22, %c0_23] : memref<1x3x2x1024xf32, #tpu.memory_space<vmem>>, vector<1x1x2x1024xf32>
      %20 = vector.shape_cast %19 : vector<1x1x2x1024xf32> to vector<2x1024xf32>
      %21 = vector.shape_cast %18 : vector<2x1024xf32> to vector<1x1x2x1024xf32>
      tpu.vector_store %arg4[%c0_20, %c0_21, %c0_22, %c0_23], %21 {strides = array<i32>} : memref<1x3x2x1024xf32, #tpu.memory_space<vmem>>, vector<1x1x2x1024xf32>,
      %c0_24 = arith.constant 0 : index
      %c0_25 = arith.constant 0 : index
      %22 = vector.load %arg6[%c0_24, %c0_25] : memref<2x1024xf32, #tpu.memory_space<vmem>>, vector<2x1024xf32>
      %c0_26 = arith.constant 0 : index
      %c1 = arith.constant 1 : index
      %c0_27 = arith.constant 0 : index
      %c0_28 = arith.constant 0 : index
      %23 = vector.load %arg4[%c0_26, %c1, %c0_27, %c0_28] : memref<1x3x2x1024xf32, #tpu.memory_space<vmem>>, vector<1x1x2x1024xf32>
      %24 = vector.shape_cast %23 : vector<1x1x2x1024xf32> to vector<2x1024xf32>
      %25 = vector.shape_cast %22 : vector<2x1024xf32> to vector<1x1x2x1024xf32>
      tpu.vector_store %arg4[%c0_26, %c1, %c0_27, %c0_28], %25 {strides = array<i32>} : memref<1x3x2x1024xf32, #tpu.memory_space<vmem>>, vector<1x1x2x1024xf32>,
      %c0_29 = arith.constant 0 : index
      %c0_30 = arith.constant 0 : index
      %26 = vector.load %arg7[%c0_29, %c0_30] : memref<2x1024xf32, #tpu.memory_space<vmem>>, vector<2x1024xf32>
      %c0_31 = arith.constant 0 : index
      %c2 = arith.constant 2 : index
      %c0_32 = arith.constant 0 : index
      %c0_33 = arith.constant 0 : index
      %27 = vector.load %arg4[%c0_31, %c2, %c0_32, %c0_33] : memref<1x3x2x1024xf32, #tpu.memory_space<vmem>>, vector<1x1x2x1024xf32>
      %28 = vector.shape_cast %27 : vector<1x1x2x1024xf32> to vector<2x1024xf32>
      %29 = vector.shape_cast %26 : vector<2x1024xf32> to vector<1x1x2x1024xf32>
      tpu.vector_store %arg4[%c0_31, %c2, %c0_32, %c0_33], %29 {strides = array<i32>} : memref<1x3x2x1024xf32, #tpu.memory_space<vmem>>, vector<1x1x2x1024xf32>,
    } else {
    }
    return
  }
  func.func @transform_0(%arg0: i32, %arg1: i32) -> (i32, i32) {
    %c1_i32 = arith.constant 1 : i32
    %0 = arith.muli %arg0, %c1_i32 : i32
    %1 = arith.addi %0, %arg1 : i32
    %c0_i32 = arith.constant 0 : i32
    %c0_i32_0 = arith.constant 0 : i32
    return %1, %c0_i32 : i32, i32
  }
  func.func @transform_1(%arg0: i32, %arg1: i32) -> (i32, i32) {
    %c1_i32 = arith.constant 1 : i32
    %0 = arith.muli %arg0, %c1_i32 : i32
    %1 = arith.addi %0, %arg1 : i32
    %c0_i32 = arith.constant 0 : i32
    %c0_i32_0 = arith.constant 0 : i32
    return %1, %c0_i32 : i32, i32
  }
  func.func @transform_2(%arg0: i32, %arg1: i32) -> (i32, i32, i32, i32) {
    %c0_i32 = arith.constant 0 : i32
    %c0_i32_0 = arith.constant 0 : i32
    %c0_i32_1 = arith.constant 0 : i32
    %c0_i32_2 = arith.constant 0 : i32
    return %arg0, %c0_i32, %c0_i32_0, %c0_i32_1 : i32, i32, i32, i32
  }
}

</mosaic_0001>

<llo_original>
// kernel: tpu_custom_call.1
$region0: #{tpu_custom_call.1}
  #allocation0 [shape = 'u32[]', space=smem, size = 0x4, offset = 0x4, fixed_abs, tag = 'smem constant byte address 0x4 - core index']
  #allocation1 [shape = 'u32[144,128]{1,0:T(1,128)}', space=vmem, size = 0x12000, scoped, tag = 'internal scratch']
  #allocation2 [shape = 'f32[2,1024]{1,0:T(2,128)}', space=vmem, size = 0x2000, scoped, tag = 'scratch operand']
  #allocation3 [shape = 'f32[2,1024]{1,0:T(2,128)}', space=vmem, size = 0x2000, scoped, tag = 'scratch operand']
  #allocation4 [shape = 'f32[2,1024]{1,0:T(2,128)}', space=vmem, size = 0x2000, scoped, tag = 'scratch operand']
  %s0 = inlined_call_operand.hbm [shape: f32[2,1024], index: 0, kind: input, shape index: {}]
  %s1 = inlined_call_operand.hbm [shape: f32[2,1024], index: 1, kind: input, shape index: {}]
  %s2 = inlined_call_operand.hbm [shape: f32[1,3,2,1024], index: 2, kind: output, shape index: {}]
  %s3 = sld [smem:[#allocation0]]
  $region34: #{tpu_custom_call.1} parent=0
    _
  %s5 = ssub.s32 1, %s3
  %s6 = scalar_select 0, %s5, %s3
  $region1: #{tpu_custom_call.1} parent=0
    #allocation5 [shape = 'u8[8192]{0}', space=vmem, size = 0x2000, scoped, tag = 'input window, operand 0, single buffered']
    #allocation6 [shape = 's32[1]{0}', space=sflag, size = 0x4, scoped, tag = 'scoped memory for tpu_custom_call.1']
    #allocation7 [shape = 's32[1]{0}', space=sflag, size = 0x4, scoped, tag = 'scoped memory for tpu_custom_call.1']
    #allocation8 [shape = 'u8[8192]{0}', space=vmem, size = 0x2000, scoped, tag = 'input window, operand 1, single buffered']
    #allocation9 [shape = 's32[1]{0}', space=sflag, size = 0x4, scoped, tag = 'scoped memory for tpu_custom_call.1']
    #allocation10 [shape = 'u8[24576]{0}', space=vmem, size = 0x6000, scoped, tag = 'output window, operand 0, single buffered']
    %7 = vsyncpa [#allocation6], 0
    %8 = vsyncpa [#allocation9], 0
    %9 = vsyncpa [#allocation7], 0
    // Predicated region
    $region2: #{tpu_custom_call.1} parent=1 // pred_check
      _
    $region3: #{tpu_custom_call.1} parent=1 // pred_check_branch
      %11 = sbr.rel (0) target = $region5
    $region4: #{tpu_custom_call.1} parent=1 // pred_region
      %s12 = sadd.s32 0, 0
      %s14 = ssub.s32 256, 256
      %15 = vsyncadd [#allocation6], %s14
      %s16 = smul.addr %s12, 8
      %s17 = smul.addr %s16, 32
      %s18 = scalar_lea.hbm %s0, %s17
      %s20 = sshll.u32 [#allocation5], 4
      %s21 = int_to_ptr.vmem [resolvable:$true] %s20
      %23 = dma.hbm_to_vmem [thread:$0]  %s18, 256, %s21, [#allocation6]
    $region5: #{tpu_custom_call.1} parent=1 // pred_fallthru
      _
    // Predicated region
    $region6: #{tpu_custom_call.1} parent=1 // pred_check
      _
    $region7: #{tpu_custom_call.1} parent=1 // pred_check_branch
      %25 = sbr.rel (0) target = $region9
    $region8: #{tpu_custom_call.1} parent=1 // pred_region
      %s26 = sadd.s32 0, 0
      %s28 = ssub.s32 256, 256
      %29 = vsyncadd [#allocation9], %s28
      %s30 = smul.addr %s26, 8
      %s31 = smul.addr %s30, 32
      %s32 = scalar_lea.hbm %s1, %s31
      %s34 = sshll.u32 [#allocation8], 4
      %s35 = int_to_ptr.vmem [resolvable:$true] %s34
      %37 = dma.hbm_to_vmem [thread:$0]  %s32, 256, %s35, [#allocation9]
    $region9: #{tpu_custom_call.1} parent=1 // pred_fallthru
      _
    // Predicated region
    $region10: #{tpu_custom_call.1} parent=1 // pred_check
      _
    $region11: #{tpu_custom_call.1} parent=1 // pred_check_branch
      %39 = sbr.rel (0) target = $region13
    $region12: #{tpu_custom_call.1} parent=1 // pred_region
      %40 = dma.done [#allocation6], 256
    $region13: #{tpu_custom_call.1} parent=1 // pred_fallthru
      _
    // Predicated region
    $region14: #{tpu_custom_call.1} parent=1 // pred_check
      _
    $region15: #{tpu_custom_call.1} parent=1 // pred_check_branch
      %42 = sbr.rel (0) target = $region17
    $region16: #{tpu_custom_call.1} parent=1 // pred_region
      %43 = dma.done [#allocation9], 256
    $region17: #{tpu_custom_call.1} parent=1 // pred_fallthru
      _
    %s44 = sadd.s32 0, 0
    %s45 = sadd.s32 0, 0
    %p46 = scmp.eq.s32.totalorder 0, 0
    // Predicated region
    $region18: #{tpu_custom_call.1} parent=1 // pred_check
      %p47 = pneg %p46
    $region19: #{tpu_custom_call.1} parent=1 // pred_check_branch
      %49 = sbr.rel (%p47) target = $region21
    $region20: #{tpu_custom_call.1} parent=1 // pred_region
      %50 = vst [vmem:[#allocation2] sm:$0xff] 0.0
      %51 = vst [vmem:[#allocation2 + $0x8] sm:$0xff] 0.0
      %52 = vst [vmem:[#allocation3] sm:$0xff] 0.0
      %53 = vst [vmem:[#allocation3 + $0x8] sm:$0xff] 0.0
      %54 = vst [vmem:[#allocation4] sm:$0xff] 0.0
      %55 = vst [vmem:[#allocation4 + $0x8] sm:$0xff] 0.0
    $region21: #{tpu_custom_call.1} parent=1 // pred_fallthru
      _
    %v56 = vld [vmem:[#allocation5] sm:$0xff]
    %v57 = vld [vmem:[#allocation5 + $0x8] sm:$0xff]
    %v58 = vld [vmem:[#allocation8] sm:$0xff]
    %v59 = vld [vmem:[#allocation8 + $0x8] sm:$0xff]
    %v60 = vmul.f32 %v56, %v58
    %v61 = vmul.f32 %v57, %v59
    %v62 = vld [vmem:[#allocation2] sm:$0xff]
    %v63 = vld [vmem:[#allocation2 + $0x8] sm:$0xff]
    %v64 = vadd.f32 %v62, %v60
    %v65 = vadd.f32 %v63, %v61
    %66 = vst [vmem:[#allocation2] sm:$0xff] %v64
    %67 = vst [vmem:[#allocation2 + $0x8] sm:$0xff] %v65
    %v68 = vld [vmem:[#allocation3] sm:$0xff]
    %v69 = vld [vmem:[#allocation3 + $0x8] sm:$0xff]
    %v70 = vadd.f32 %v68, %v56
    %v71 = vadd.f32 %v69, %v57
    %72 = vst [vmem:[#allocation3] sm:$0xff] %v70
    %73 = vst [vmem:[#allocation3 + $0x8] sm:$0xff] %v71
    %v74 = vld [vmem:[#allocation4] sm:$0xff]
    %v75 = vld [vmem:[#allocation4 + $0x8] sm:$0xff]
    %v76 = vadd.f32 %v74, %v58
    %v77 = vadd.f32 %v75, %v59
    %78 = vst [vmem:[#allocation4] sm:$0xff] %v76
    %79 = vst [vmem:[#allocation4 + $0x8] sm:$0xff] %v77
    // Predicated region
    $region22: #{tpu_custom_call.1} parent=1 // pred_check
      %p80 = pneg %p46
    $region23: #{tpu_custom_call.1} parent=1 // pred_check_branch
      %82 = sbr.rel (%p80) target = $region25
    $region24: #{tpu_custom_call.1} parent=1 // pred_region
      %v83 = vld [vmem:[#allocation2] sm:$0xff]
      %v84 = vld [vmem:[#allocation2 + $0x8] sm:$0xff]
      %85 = vst [vmem:[#allocation10] sm:$0xff] %v83
      %86 = vst [vmem:[#allocation10 + $0x8] sm:$0xff] %v84
      %v87 = vld [vmem:[#allocation3] sm:$0xff]
      %v88 = vld [vmem:[#allocation3 + $0x8] sm:$0xff]
      %s89 = scalar_lea.vmem [#allocation10], 16
      %90 = vst [vmem:[%s89] sm:$0xff] %v87
      %91 = vst [vmem:[%s89 + $0x8] sm:$0xff] %v88
      %v92 = vld [vmem:[#allocation4] sm:$0xff]
      %v93 = vld [vmem:[#allocation4 + $0x8] sm:$0xff]
      %s94 = scalar_lea.vmem [#allocation10], 32
      %95 = vst [vmem:[%s94] sm:$0xff] %v92
      %96 = vst [vmem:[%s94 + $0x8] sm:$0xff] %v93
    $region25: #{tpu_custom_call.1} parent=1 // pred_fallthru
      _
    // Predicated region
    $region26: #{tpu_custom_call.1} parent=1 // pred_check
      _
    $region27: #{tpu_custom_call.1} parent=1 // pred_check_branch
      %98 = sbr.rel (0) target = $region29
    $region28: #{tpu_custom_call.1} parent=1 // pred_region
      %s100 = ssub.s32 768, 768
      %101 = vsyncadd [#allocation7], %s100
      %s102 = sshll.u32 [#allocation10], 4
      %s103 = int_to_ptr.vmem [resolvable:$true] %s102
      %108 = dma.vmem_to_hbm [thread:$0]  %s103, 768, %s2, [#allocation7], 256, 256, 16
    $region29: #{tpu_custom_call.1} parent=1 // pred_fallthru
      _
    // Predicated region
    $region30: #{tpu_custom_call.1} parent=1 // pred_check
      _
    $region31: #{tpu_custom_call.1} parent=1 // pred_check_branch
      %110 = sbr.rel (0) target = $region33
    $region32: #{tpu_custom_call.1} parent=1 // pred_region
      %111 = dma.done [#allocation7], 768
    $region33: #{tpu_custom_call.1} parent=1 // pred_fallthru
      _
    %112 = vsyncpa [#allocation6], 1
    %113 = vsyncpa [#allocation9], 1
    %114 = vsyncpa [#allocation7], 1

</llo_original>
